<compile_context>
chip_gen: v6e
topology: v6e:2x2x1
jax: 0.10.0
libtpu: 0.0.40
codegen_flags: <defaults>
</compile_context>

<pallas_src>
import functools

import jax
import jax.numpy as jnp
from jax import lax
from jax.experimental import pallas as pl
from jax.experimental.pallas import tpu as pltpu


# ----------------------------------------------------------------------------
# Bilinear interpolation (PyTorch align_corners=False) as a matmul kernel.
# ----------------------------------------------------------------------------

def _interp_matrix(out_size, in_size):
    """(out_size, in_size) interpolation matrix, PyTorch align_corners=False."""
    o = jnp.arange(out_size, dtype=jnp.float32)
    src = jnp.maximum((o + 0.5) * (in_size / out_size) - 0.5, 0.0)
    i0 = jnp.minimum(jnp.floor(src), in_size - 1)
    frac = src - i0
    i0 = i0.astype(jnp.int32)
    i1 = jnp.minimum(i0 + 1, in_size - 1)
    return (jax.nn.one_hot(i0, in_size, dtype=jnp.float32) * (1.0 - frac)[:, None]
            + jax.nn.one_hot(i1, in_size, dtype=jnp.float32) * frac[:, None])


def _resize_kernel(x_ref, m_ref, o_ref):
    # x_ref: (1, ct, Hi*Wi), m_ref: (Ho*Wo, Hi*Wi), o_ref: (1, ct, Ho*Wo)
    x = x_ref[0].astype(jnp.float32)
    m = m_ref[...]
    y = lax.dot_general(x, m, (((1,), (1,)), ((), ())),
                        preferred_element_type=jnp.float32)
    o_ref[0] = y.astype(o_ref.dtype)


def bilinear_resize_flat(x_nchw, out_h, out_w, c_tile=256):
    """(N, C, Hi, Wi) -> (N, C, out_h*out_w), bilinear, align_corners=False."""
    n, c, hi, wi = x_nchw.shape
    wh = _interp_matrix(out_h, hi)                      # (Ho, Hi)
    ww = _interp_matrix(out_w, wi)                      # (Wo, Wi)
    # Dense Kronecker interpolation matrix: a single lane-dense MXU matmul per
    # block; the contraction dim (Hi*Wi) is tiny at these stage sizes.
    # TODO(synk): at production resolution (210x380) switch to the separable
    # two-matmul form; the dense (Ho*Wo, Hi*Wi) matrix would not fit.
    m = (wh[:, None, :, None] * ww[None, :, None, :]).reshape(out_h * out_w,
                                                              hi * wi)
    x_flat = x_nchw.reshape(n, c, hi * wi)
    ct = c_tile if (c % c_tile == 0) else c

    return pl.pallas_call(
        _resize_kernel,
        out_shape=jax.ShapeDtypeStruct((n, c, out_h * out_w), x_nchw.dtype),
        grid_spec=pltpu.PrefetchScalarGridSpec(
            num_scalar_prefetch=0,
            grid=(c // ct, n),
            in_specs=[
                pl.BlockSpec((1, ct, hi * wi), lambda cb, b: (b, cb, 0)),
                pl.BlockSpec((out_h * out_w, hi * wi), lambda cb, b: (0, 0)),
            ],
            out_specs=pl.BlockSpec((1, ct, out_h * out_w),
                                   lambda cb, b: (b, cb, 0)),
        ),
        compiler_params=pltpu.CompilerParams(
            dimension_semantics=("parallel", "parallel"),
            vmem_limit_bytes=48 * 1024 * 1024),
    )(x_flat, m)


# ----------------------------------------------------------------------------
# 3x3 conv (padding=1, no bias) + fused BN affine + optional ReLU.
# Works on (N, Cin, H*W) with the spatial axis on TPU lanes.
# ----------------------------------------------------------------------------

def _lane_pad(width):
    # Lane-aligned padding slab; must be >= width + 1 so every vertical tap of
    # a boundary row reads zeros from inside the scratch buffer.
    return ((width + 1 + 127) // 128) * 128


def _conv3x3_kernel(x_ref, w_ref, m_ref, s_ref, b_ref, o_ref, xp_ref, *,
                    height, width, apply_relu):
    hw = height * width
    pad = _lane_pad(width)

    # Refresh the two zero padding slabs (cheap, lane-aligned stores) and drop
    # the input tile in between.  Vertical out-of-range taps then read zeros.
    zeros_pad = jnp.zeros((xp_ref.shape[0], pad), jnp.float32)
    xp_ref[:, :pad] = zeros_pad
    xp_ref[:, pad + hw:] = zeros_pad
    xp_ref[:, pad:pad + hw] = x_ref[0].astype(jnp.float32)

    def tap(dy, dx):
        shift = dy * width + dx
        xs = xp_ref[:, pad + shift:pad + shift + hw]             # (Cin, HW)
        wk = w_ref[3 * (dy + 1) + (dx + 1)].astype(jnp.float32)  # (Cout_t, Cin)
        return lax.dot_general(wk, xs, (((1,), (0,)), ((), ())),
                               preferred_element_type=jnp.float32)

    # Centre column of the 3x3 stencil never wraps horizontally -> no mask.
    acc = tap(-1, 0) + tap(0, 0) + tap(1, 0)
    # Left / right stencil columns share one row-wrap mask per column group;
    # masking the summed MXU output (Cout_t x HW) once is cheaper than masking
    # the (Cin x HW) operand of every tap.
    acc = acc + (tap(-1, -1) + tap(0, -1) + tap(1, -1)) * m_ref[0]
    acc = acc + (tap(-1, 1) + tap(0, 1) + tap(1, 1)) * m_ref[1]

    y = acc * s_ref[...] + b_ref[...]                            # fused BN affine
    if apply_relu:
        y = jnp.maximum(y, 0.0)
    o_ref[0] = y.astype(o_ref.dtype)


def conv3x3_bn_act(x_flat, w_oihw, scale, shift, *, height, width, apply_relu,
                   cout_tile=256):
    """x_flat: (N, Cin, H*W); w_oihw: (Cout, Cin, 3, 3) -> (N, Cout, H*W)."""
    n, cin, hw = x_flat.shape
    cout = w_oihw.shape[0]
    assert hw == height * width and w_oihw.shape[1] == cin
    ct = cout_tile if (cout % cout_tile == 0) else cout

    # Weights in MXU-friendly (tap, Cout, Cin) layout.
    w_r = jnp.transpose(w_oihw, (2, 3, 0, 1)).reshape(9, cout, cin)

    # Row-wrap masks over the flattened spatial axis (one per shifted stencil
    # column).  Vertical bounds are handled by the zero padding slabs.
    col = jnp.arange(width)
    mask2 = jnp.stack([
        jnp.tile((col != 0).astype(jnp.float32), height),          # dx = -1
        jnp.tile((col != width - 1).astype(jnp.float32), height),  # dx = +1
    ]).reshape(2, 1, hw)

    s2 = scale.reshape(cout, 1).astype(jnp.float32)
    b2 = shift.reshape(cout, 1).astype(jnp.float32)

    pad = _lane_pad(width)
    kern = functools.partial(_conv3x3_kernel, height=height, width=width,
                             apply_relu=apply_relu)
    return pl.pallas_call(
        kern,
        out_shape=jax.ShapeDtypeStruct((n, cout, hw), x_flat.dtype),
        grid_spec=pltpu.PrefetchScalarGridSpec(
            num_scalar_prefetch=0,
            grid=(cout // ct, n),                       # cout block outermost:
            in_specs=[                                  # weights stay resident
                pl.BlockSpec((1, cin, hw), lambda cb, b: (b, 0, 0)),
                pl.BlockSpec((9, ct, cin), lambda cb, b: (0, cb, 0)),
                pl.BlockSpec((2, 1, hw), lambda cb, b: (0, 0, 0)),
                pl.BlockSpec((ct, 1), lambda cb, b: (cb, 0)),
                pl.BlockSpec((ct, 1), lambda cb, b: (cb, 0)),
            ],
            out_specs=pl.BlockSpec((1, ct, hw), lambda cb, b: (b, cb, 0)),
            scratch_shapes=[pltpu.VMEM((cin, hw + 2 * pad), jnp.float32)],
        ),
        compiler_params=pltpu.CompilerParams(
            dimension_semantics=("parallel", "parallel"),
            vmem_limit_bytes=48 * 1024 * 1024),
    )(x_flat, w_r, mask2, s2, b2)


# ----------------------------------------------------------------------------
# FNN / Decoder forward.
# ----------------------------------------------------------------------------

def fnn_forward(x_flat, conv_ws, bn_scales, bn_shifts, *, height, width):
    n_layers = len(conv_ws)
    for i, w in enumerate(conv_ws):
        last = i == n_layers - 1
        if last:
            scale = jnp.ones((w.shape[0],), jnp.float32)
            shift = jnp.zeros((w.shape[0],), jnp.float32)
        else:
            scale, shift = bn_scales[i], bn_shifts[i]
        x_flat = conv3x3_bn_act(x_flat, w, scale, shift, height=height,
                                width=width, apply_relu=not last)
    return x_flat


def decoder_forward(stages, conv_ws, bn_scales, bn_shifts, *, out_h, out_w):
    flats = [bilinear_resize_flat(s.astype(jnp.float32), out_h, out_w)
             for s in stages]
    x = jnp.concatenate(flats, axis=1)                  # (N, sumC, H*W)
    y = fnn_forward(x, conv_ws, bn_scales, bn_shifts, height=out_h, width=out_w)
    n, c, _ = y.shape
    return y.reshape(n, c, out_h, out_w)


# ----------------------------------------------------------------------------
# Pure-JAX reference (independent: gather-based resize + lax.conv).
# ----------------------------------------------------------------------------

def _resize_ref(x, out_h, out_w):
    _, _, hi, wi = x.shape

    def src_idx(o_size, i_size):
        o = jnp.arange(o_size, dtype=jnp.float32)
        src = jnp.maximum((o + 0.5) * (i_size / o_size) - 0.5, 0.0)
        i0 = jnp.minimum(jnp.floor(src), i_size - 1).astype(jnp.int32)
        i1 = jnp.minimum(i0 + 1, i_size - 1)
        lam = src - i0.astype(jnp.float32)
        return i0, i1, lam

    h0, h1, lh = src_idx(out_h, hi)
    w0, w1, lw = src_idx(out_w, wi)
    xh = (x[:, :, h0, :] * (1 - lh)[None, None, :, None]
          + x[:, :, h1, :] * lh[None, None, :, None])
    return (xh[:, :, :, w0] * (1 - lw)[None, None, None, :]
            + xh[:, :, :, w1] * lw[None, None, None, :])


def _decoder_ref(stages, conv_ws, bn_scales, bn_shifts, *, out_h, out_w):
    ups = [_resize_ref(s.astype(jnp.float32), out_h, out_w) for s in stages]
    x = jnp.concatenate(ups, axis=1)
    n_layers = len(conv_ws)
    for i, w in enumerate(conv_ws):
        x = lax.conv_general_dilated(
            x, w, (1, 1), ((1, 1), (1, 1)),
            dimension_numbers=('NCHW', 'OIHW', 'NCHW'),
            precision=lax.Precision.HIGHEST)
        if i < n_layers - 1:
            x = (x * bn_scales[i][None, :, None, None]
                 + bn_shifts[i][None, :, None, None])
            x = jnp.maximum(x, 0.0)
    return x


# ----------------------------------------------------------------------------
# Demo / self-test.
# ----------------------------------------------------------------------------

if __name__ == "__main__":
    key = jax.random.PRNGKey(0)
    keys = iter(jax.random.split(key, 32))

    batch = 2
    out_h, out_w = 16, 16                 # small stand-ins for (210, 380)
    rec_channels = 3
    stage_channels = (8, 16, 40, 64)      # sum_encoder_embed_dims = 128 (small)
    stage_spatial = ((8, 12), (6, 10), (4, 6), (3, 4))
    conv_channels = (512, 256, 128, 64, rec_channels)   # fixed by FNN
    eps = 1e-5

    stages = []
    for c, (hi, wi) in zip(stage_channels, stage_spatial):
        stages.append(jax.random.normal(next(keys), (batch, c, hi, wi),
                                        dtype=jnp.float32))

    conv_ws, bn_scales, bn_shifts = [], [], []
    cin = sum(stage_channels)
    for i, cout in enumerate(conv_channels):
        w = jax.random.normal(next(keys), (cout, cin, 3, 3),
                              dtype=jnp.float32) / jnp.sqrt(9.0 * cin)
        conv_ws.append(w)
        if i < len(conv_channels) - 1:
            gamma = 0.5 + jax.random.uniform(next(keys), (cout,), jnp.float32)
            beta = 0.1 * jax.random.normal(next(keys), (cout,), jnp.float32)
            rmean = 0.1 * jax.random.normal(next(keys), (cout,), jnp.float32)
            rvar = 0.5 + jax.random.uniform(next(keys), (cout,), jnp.float32)
            scale = gamma / jnp.sqrt(rvar + eps)
            shift = beta - rmean * scale
            bn_scales.append(scale)
            bn_shifts.append(shift)
        cin = cout

    out = decoder_forward(stages, conv_ws, bn_scales, bn_shifts,
                          out_h=out_h, out_w=out_w)
    out = jax.block_until_ready(out)

    ref = _decoder_ref(stages, conv_ws, bn_scales, bn_shifts,
                       out_h=out_h, out_w=out_w)
    ref = jax.block_until_ready(ref)

    assert out.shape == (batch, rec_channels, out_h, out_w), out.shape
    assert out.dtype == jnp.float32
    err = float(jnp.max(jnp.abs(out - ref)) / (jnp.max(jnp.abs(ref)) + 1e-6))
    assert err < 1e-2, f"max relative error too large: {err}"

    print("KERNEL_OK")
</pallas_src>

<mosaic_0001>
module attributes {stable_mosaic.version = 11 : i64} {
  func.func @_resize_kernel(%arg0: i32, %arg1: i32, %arg2: memref<1x8x96xf32, #tpu.memory_space<vmem>>, %arg3: memref<256x96xf32, #tpu.memory_space<vmem>>, %arg4: memref<1x8x256xf32, #tpu.memory_space<vmem>>) attributes {dimension_semantics = [#tpu.dimension_semantics<parallel>, #tpu.dimension_semantics<parallel>], iteration_bounds = array<i64: 1, 2>, scalar_prefetch = 0 : i64, scratch_operands = 0 : i64, tpu.core_type = #tpu.core_type<tc>, window_params = [{transform_indices = @transform_0, window_bounds = array<i64: 1, 8, 96>}, {pipeline_mode = #tpu.pipeline_mode<synchronous>, transform_indices = @transform_1, window_bounds = array<i64: 256, 96>}, {transform_indices = @transform_2, window_bounds = array<i64: 1, 8, 256>}]} {
    %c0 = arith.constant 0 : index
    %c0_0 = arith.constant 0 : index
    %c0_1 = arith.constant 0 : index
    %0 = vector.load %arg2[%c0, %c0_0, %c0_1] : memref<1x8x96xf32, #tpu.memory_space<vmem>>, vector<1x8x96xf32>
    %1 = vector.shape_cast %0 : vector<1x8x96xf32> to vector<8x96xf32>
    %c0_2 = arith.constant 0 : index
    %c0_3 = arith.constant 0 : index
    %2 = vector.load %arg3[%c0_2, %c0_3] : memref<256x96xf32, #tpu.memory_space<vmem>>, vector<256x96xf32>
    %cst = arith.constant dense<0.000000e+00> : vector<8x256xf32>
    %3 = tpu.matmul %1, %2, %cst {dimension_numbers = #tpu.dot_dimension_numbers<[1], [1], [0], [0], [0, 0, 1, 0], [], []>} : vector<8x96xf32>, vector<256x96xf32>, vector<8x256xf32> -> vector<8x256xf32>
    %c0_4 = arith.constant 0 : index
    %c0_5 = arith.constant 0 : index
    %c0_6 = arith.constant 0 : index
    %4 = vector.load %arg4[%c0_4, %c0_5, %c0_6] : memref<1x8x256xf32, #tpu.memory_space<vmem>>, vector<1x8x256xf32>
    %5 = vector.shape_cast %4 : vector<1x8x256xf32> to vector<8x256xf32>
    %6 = vector.shape_cast %3 : vector<8x256xf32> to vector<1x8x256xf32>
    tpu.vector_store %arg4[%c0_4, %c0_5, %c0_6], %6 {strides = array<i32>} : memref<1x8x256xf32, #tpu.memory_space<vmem>>, vector<1x8x256xf32>,
    return
  }
  func.func @transform_0(%arg0: i32, %arg1: i32) -> (i32, i32, i32) {
    %c0_i32 = arith.constant 0 : i32
    %c0_i32_0 = arith.constant 0 : i32
    return %arg1, %arg0, %c0_i32 : i32, i32, i32
  }
  func.func @transform_1(%arg0: i32, %arg1: i32) -> (i32, i32) {
    %c0_i32 = arith.constant 0 : i32
    %c0_i32_0 = arith.constant 0 : i32
    %c0_i32_1 = arith.constant 0 : i32
    return %c0_i32, %c0_i32_0 : i32, i32
  }
  func.func @transform_2(%arg0: i32, %arg1: i32) -> (i32, i32, i32) {
    %c0_i32 = arith.constant 0 : i32
    %c0_i32_0 = arith.constant 0 : i32
    return %arg1, %arg0, %c0_i32 : i32, i32, i32
  }
}

</mosaic_0001>

<llo_original>
// kernel: tpu_custom_call.1
$region0: #{tpu_custom_call.1}
  #allocation0 [shape = 'u32[]', space=smem, size = 0x4, offset = 0x4, fixed_abs, tag = 'smem constant byte address 0x4 - core index']
  #allocation1 [shape = 'u32[144,128]{1,0:T(1,128)}', space=vmem, size = 0x12000, scoped, tag = 'internal scratch']
  %s0 = inlined_call_operand.vmem [shape: f32[2,8,96], index: 0, kind: input, shape index: {}]
  %s1 = inlined_call_operand.vmem [shape: f32[256,96], index: 1, kind: input, shape index: {}]
  %s2 = inlined_call_operand.hbm [shape: f32[2,8,256], index: 2, kind: output, shape index: {}]
  %s3 = sld [smem:[#allocation0]]
  $region41: #{tpu_custom_call.1} parent=0
    _
  %s5 = ssub.s32 1, %s3
  %s6 = scalar_select 0, %s5, %s3
  $region1: #{tpu_custom_call.1} parent=0
    #allocation2 [shape = 'u8[16384]{0}', space=vmem, size = 0x4000, scoped, tag = 'output window, operand 0']
    #allocation3 [shape = 's32[2]{0}', space=sflag, size = 0x8, scoped, tag = 'scoped memory for tpu_custom_call.1']
    %7 = vsyncpa [#allocation3], 0
    %s8 = scalar_lea.sflag [#allocation3], 1
    %9 = vsyncpa %s8, 0
    loop: start=0, step=1, limit=4
    $region2: #{tpu_custom_call.1} parent=1 // loop_pre_header
      _
    $region3: #{tpu_custom_call.1} parent=1 // loop_header
      %s11 = sphi 0, %s15
      %p12 = scmp.ge.s32.totalorder %s11, 4
      %s18 = sphi 0, %s30
      %s19 = sphi 0, %s26
      %s20 = sphi 0, %s18
      %s21 = sphi 0, %s19
      %s22 = sphi 0, %s20
      %s23 = sphi 0, %s21
      %s35 = sphi 0, %s37
      %s38 = sphi 0, %s35
      %s39 = sphi 0, %s38
      %s55 = sphi 0, %s39
      %s59 = sphi 0, %s59
      %s61 = sphi 0, %s59
      %s62 = sphi 0, %s61
      %s76 = sphi 0, %s62
      %s84 = sphi 0, %s86
      %s87 = sphi 0, %s84
      %s88 = sphi 0, %s87
      %s104 = sphi 0, %s88
    $region4: #{tpu_custom_call.1} parent=1 // loop_header_branch
      %14 = sbr.rel (%p12) target = $region8
    $region5: #{tpu_custom_call.1} parent=1 // loop_body
      %s16 = ssub.s32 %s11, 1
      %s17 = ssub.s32 %s11, 2
      %s24 = sadd.s32 1, %s19
      %p25 = scmp.ge.s32.totalorder %s24, 2
      %s26 = scalar_select %p25, 0, %s24
      %s27 = sadd.s32 1, %s18
      %s28 = scalar_select %p25, %s27, %s18
      %p29 = scmp.ge.s32.totalorder %s28, 1
      %s30 = scalar_select %p29, 0, %s28
      %s31 = ssub.s32 %s19, %s26
      %s32 = ssub.s32 %s18, %s30
      %s33 = sor.u32 %s31, %s32
      %p34 = scmp.eq.s32.totalorder %s33, 0
      %s36 = sadd.s32 %s35, 1
      %s37 = scalar_select %p34, %s35, %s36
      %p40 = pneg %p34
      %p41 = scmp.eq.s32.totalorder %s11, 1
      %p42 = por %p40, %p41
      %p43 = scmp.ne.s32.totalorder %s35, %s38
      %p44 = scmp.eq.s32.totalorder %s11, 0
      %p45 = por %p43, %p44
      %p46 = scmp.ne.s32.totalorder %s35, %s38
      %p47 = scmp.eq.s32.totalorder %s16, 1
      %p48 = por %p46, %p47
      %p49 = scmp.ne.s32.totalorder %s38, %s39
      %p50 = scmp.eq.s32.totalorder %s16, 0
      %p51 = por %p49, %p50
      %p52 = scmp.ne.s32.totalorder %s38, %s39
      %p53 = scmp.eq.s32.totalorder %s17, 1
      %p54 = por %p52, %p53
      %p56 = scmp.ne.s32.totalorder %s39, %s55
      %p57 = scmp.eq.s32.totalorder %s17, 0
      %p58 = por %p56, %p57
      %s60 = sadd.s32 %s59, 1
      %p63 = scmp.eq.s32.totalorder %s11, 1
      %p64 = scmp.ne.s32.totalorder %s59, %s61
      %p65 = scmp.eq.s32.totalorder %s11, 0
      %p66 = por %p64, %p65
      %p67 = scmp.ne.s32.totalorder %s59, %s61
      %p68 = scmp.eq.s32.totalorder %s16, 1
      %p69 = por %p67, %p68
      %p70 = scmp.ne.s32.totalorder %s61, %s62
      %p71 = scmp.eq.s32.totalorder %s16, 0
      %p72 = por %p70, %p71
      %p73 = scmp.ne.s32.totalorder %s61, %s62
      %p74 = scmp.eq.s32.totalorder %s17, 1
      %p75 = por %p73, %p74
      %p77 = scmp.ne.s32.totalorder %s62, %s76
      %p78 = scmp.eq.s32.totalorder %s17, 0
      %p79 = por %p77, %p78
      %s80 = ssub.s32 %s19, %s26
      %s81 = ssub.s32 %s18, %s30
      %s82 = sor.u32 %s80, %s81
      %p83 = scmp.eq.s32.totalorder %s82, 0
      %s85 = sadd.s32 %s84, 1
      %s86 = scalar_select %p83, %s84, %s85
      %p89 = pneg %p83
      %p90 = scmp.eq.s32.totalorder %s11, 1
      %p91 = por %p89, %p90
      %p92 = scmp.ne.s32.totalorder %s84, %s87
      %p93 = scmp.eq.s32.totalorder %s11, 0
      %p94 = por %p92, %p93
      %p95 = scmp.ne.s32.totalorder %s84, %s87
      %p96 = scmp.eq.s32.totalorder %s16, 1
      %p97 = por %p95, %p96
      %p98 = scmp.ne.s32.totalorder %s87, %s88
      %p99 = scmp.eq.s32.totalorder %s16, 0
      %p100 = por %p98, %p99
      %p101 = scmp.ne.s32.totalorder %s87, %s88
      %p102 = scmp.eq.s32.totalorder %s17, 1
      %p103 = por %p101, %p102
      %p105 = scmp.ne.s32.totalorder %s88, %s104
      %p106 = scmp.eq.s32.totalorder %s17, 0
      %p107 = por %p105, %p106
      %p108 = scmp.le.s32.totalorder 1, %s11
      %p109 = scmp.lt.s32.totalorder %s11, 3
      %p110 = pnand %p108, %p109
      %p111 = pneg %p110
      // Predicated region
      $region9: #{tpu_custom_call.1} parent=5 // pred_check
        _
      $region10: #{tpu_custom_call.1} parent=5 // pred_check_branch
        %113 = sbr.rel (%p110) target = $region12
      $region11: #{tpu_custom_call.1} parent=5 // pred_region
        %s114 = ssub.s32 %s11, 1
        // Predicated region
        $region13: #{tpu_custom_call.1} parent=11 // pred_check
          %p115 = pneg %p72
        $region14: #{tpu_custom_call.1} parent=11 // pred_check_branch
          %117 = sbr.rel (%p115) target = $region16
        $region15: #{tpu_custom_call.1} parent=11 // pred_region
          _
        $region16: #{tpu_custom_call.1} parent=11 // pred_fallthru
          _
      $region12: #{tpu_custom_call.1} parent=5 // pred_fallthru
        _
      %p118 = scmp.lt.s32.totalorder %s11, 2
      // Predicated region
      $region17: #{tpu_custom_call.1} parent=5 // pred_check
        %p119 = pneg %p118
      $region18: #{tpu_custom_call.1} parent=5 // pred_check_branch
        %121 = sbr.rel (%p119) target = $region20
      $region19: #{tpu_custom_call.1} parent=5 // pred_region
        // Predicated region
        $region21: #{tpu_custom_call.1} parent=19 // pred_check
          %p122 = pneg %p45
        $region22: #{tpu_custom_call.1} parent=19 // pred_check_branch
          %124 = sbr.rel (%p122) target = $region24
        $region23: #{tpu_custom_call.1} parent=19 // pred_region
          %p125 = scmp.lt.s32.totalorder %s19, 1
          %s126 = scalar_select %p125, %s19, 1
          %p127 = scmp.lt.s32.totalorder %s18, 0
          %s128 = scalar_select %p127, %s18, 0
          %s129 = sadd.s32 %s128, %s126
          %s130 = smul.addr %s129, 8
          %s131 = scalar_lea.vmem %s0, %s130
        $region24: #{tpu_custom_call.1} parent=19 // pred_fallthru
          _
      $region20: #{tpu_custom_call.1} parent=5 // pred_fallthru
        _
      %p132 = scmp.le.s32.totalorder 1, %s11
      %p133 = scmp.lt.s32.totalorder %s11, 3
      %p134 = pnand %p132, %p133
      %p135 = pneg %p134
      // Predicated region
      $region25: #{tpu_custom_call.1} parent=5 // pred_check
        _
      $region26: #{tpu_custom_call.1} parent=5 // pred_check_branch
        %137 = sbr.rel (%p134) target = $region28
      $region27: #{tpu_custom_call.1} parent=5 // pred_region
        %s138 = ssub.s32 %s11, 1
        %p139 = scmp.lt.s32.totalorder %s21, 1
        %s140 = scalar_select %p139, %s21, 1
        %p141 = scmp.lt.s32.totalorder %s20, 0
        %s142 = scalar_select %p141, %s20, 0
        %s143 = sadd.s32 %s142, %s140
        %s144 = smul.addr %s143, 8
        %s145 = scalar_lea.vmem %s0, %s144
        %p146 = pneg %p51
        %p147 = pneg %p48
        %p148 = pneg %p72
        %p149 = pneg %p69
        %p150 = pneg %p100
        %p151 = pneg %p97
        %s152 = sand.u32 %s87, 1
        %s153 = scalar_lea.sflag [#allocation3], %s152
        %s154 = sand.u32 %s87, 1
        %s155 = smul.addr %s154, 16
        %s156 = scalar_lea.vmem [#allocation2], %s155
        %p157 = scmp.lt.s32.totalorder %s21, 1
        %s158 = scalar_select %p157, %s21, 1
        %p159 = scmp.lt.s32.totalorder %s20, 0
        %s160 = scalar_select %p159, %s20, 0
        %s161 = sadd.s32 %s160, %s158
        %s162 = smul.addr %s161, 8
        %s163 = scalar_lea.vmem %s0, %s162
        %v164 = vld [vmem:[%s163] sm:$0xff]
        %v165 = vld [vmem:[%s1] sm:$0xff]
        %v166 = vld [vmem:[%s1 + $0x8] sm:$0xff]
        %v167 = vld [vmem:[%s1 + $0x10] sm:$0xff]
        %v168 = vld [vmem:[%s1 + $0x18] sm:$0xff]
        %v169 = vld [vmem:[%s1 + $0x20] sm:$0xff]
        %v170 = vld [vmem:[%s1 + $0x28] sm:$0xff]
        %v171 = vld [vmem:[%s1 + $0x30] sm:$0xff]
        %v172 = vld [vmem:[%s1 + $0x38] sm:$0xff]
        %v173 = vld [vmem:[%s1 + $0x40] sm:$0xff]
        %v174 = vld [vmem:[%s1 + $0x48] sm:$0xff]
        %v175 = vld [vmem:[%s1 + $0x50] sm:$0xff]
        %v176 = vld [vmem:[%s1 + $0x58] sm:$0xff]
        %v177 = vld [vmem:[%s1 + $0x60] sm:$0xff]
        %v178 = vld [vmem:[%s1 + $0x68] sm:$0xff]
        %v179 = vld [vmem:[%s1 + $0x70] sm:$0xff]
        %v180 = vld [vmem:[%s1 + $0x78] sm:$0xff]
        %v181 = vld [vmem:[%s1 + $0x80] sm:$0xff]
        %v182 = vld [vmem:[%s1 + $0x88] sm:$0xff]
        %v183 = vld [vmem:[%s1 + $0x90] sm:$0xff]
        %v184 = vld [vmem:[%s1 + $0x98] sm:$0xff]
        %v185 = vld [vmem:[%s1 + $0xa0] sm:$0xff]
        %v186 = vld [vmem:[%s1 + $0xa8] sm:$0xff]
        %v187 = vld [vmem:[%s1 + $0xb0] sm:$0xff]
        %v188 = vld [vmem:[%s1 + $0xb8] sm:$0xff]
        %v189 = vld [vmem:[%s1 + $0xc0] sm:$0xff]
        %v190 = vld [vmem:[%s1 + $0xc8] sm:$0xff]
        %v191 = vld [vmem:[%s1 + $0xd0] sm:$0xff]
        %v192 = vld [vmem:[%s1 + $0xd8] sm:$0xff]
        %v193 = vld [vmem:[%s1 + $0xe0] sm:$0xff]
        %v194 = vld [vmem:[%s1 + $0xe8] sm:$0xff]
        %v195 = vld [vmem:[%s1 + $0xf0] sm:$0xff]
        %v196 = vld [vmem:[%s1 + $0xf8] sm:$0xff]
        %vm197 = vcmask 785408
        %v199 = vsel %vm197, %v164, 0
        %v202 = vsel %vm197, %v165, 0
        %v205 = vsel %vm197, %v166, 0
        %v208 = vsel %vm197, %v167, 0
        %v211 = vsel %vm197, %v168, 0
        %v214 = vsel %vm197, %v169, 0
        %v217 = vsel %vm197, %v170, 0
        %v220 = vsel %vm197, %v171, 0
        %v223 = vsel %vm197, %v172, 0
        %v226 = vsel %vm197, %v173, 0
        %v229 = vsel %vm197, %v174, 0
        %v232 = vsel %vm197, %v175, 0
        %v235 = vsel %vm197, %v176, 0
        %v238 = vsel %vm197, %v177, 0
        %v241 = vsel %vm197, %v178, 0
        %v244 = vsel %vm197, %v179, 0
        %v247 = vsel %vm197, %v180, 0
        %v250 = vsel %vm197, %v181, 0
        %v253 = vsel %vm197, %v182, 0
        %v256 = vsel %vm197, %v183, 0
        %v259 = vsel %vm197, %v184, 0
        %v262 = vsel %vm197, %v185, 0
        %v265 = vsel %vm197, %v186, 0
        %v268 = vsel %vm197, %v187, 0
        %v271 = vsel %vm197, %v188, 0
        %v274 = vsel %vm197, %v189, 0
        %v277 = vsel %vm197, %v190, 0
        %v280 = vsel %vm197, %v191, 0
        %v283 = vsel %vm197, %v192, 0
        %v286 = vsel %vm197, %v193, 0
        %v289 = vsel %vm197, %v194, 0
        %v292 = vsel %vm197, %v195, 0
        %v295 = vsel %vm197, %v196, 0
        %297 = vmatprep.subr.mxu0 0.0
        %298 = vmatpush1.xpose.msra.mxu0 %v247
        %299 = vmatprep.subr.mxu0 0.0
        %300 = vmatpush1.xpose.msra.mxu0 %v244
        %301 = vmatprep.subr.mxu0 0.0
        %302 = vmatpush1.xpose.msra.mxu0 %v241
        %303 = vmatprep.subr.mxu0 0.0
        %304 = vmatpush1.xpose.msra.mxu0 %v238
        %305 = vmatprep.subr.mxu0 0.0
        %306 = vmatpush1.xpose.msra.mxu0 %v235
        %307 = vmatprep.subr.mxu0 0.0
        %308 = vmatpush1.xpose.msra.mxu0 %v232
        %309 = vmatprep.subr.mxu0 0.0
        %310 = vmatpush1.xpose.msra.mxu0 %v229
        %311 = vmatprep.subr.mxu0 0.0
        %312 = vmatpush1.xpose.msra.mxu0 %v226
        %313 = vmatprep.subr.mxu0 0.0
        %314 = vmatpush1.xpose.msra.mxu0 %v223
        %315 = vmatprep.subr.mxu0 0.0
        %316 = vmatpush1.xpose.msra.mxu0 %v220
        %317 = vmatprep.subr.mxu0 0.0
        %318 = vmatpush1.xpose.msra.mxu0 %v217
        %319 = vmatprep.subr.mxu0 0.0
        %320 = vmatpush1.xpose.msra.mxu0 %v214
        %321 = vmatprep.subr.mxu0 0.0
        %322 = vmatpush1.xpose.msra.mxu0 %v211
        %323 = vmatprep.subr.mxu0 0.0
        %324 = vmatpush1.xpose.msra.mxu0 %v208
        %325 = vmatprep.subr.mxu0 0.0
        %326 = vmatpush1.xpose.msra.mxu0 %v205
        %327 = vmatprep.subr.mxu0 0.0
        %328 = vmatpush1.xpose.msra.mxu0 %v202
        %329 = vmatprep.subr.mxu0 0.0
        %330 = vmatpush2.xpose.msra.mxu0 %v295
        %331 = vmatprep.subr.mxu0 0.0
        %332 = vmatpush2.xpose.msra.mxu0 %v292
        %333 = vmatprep.subr.mxu0 0.0
        %334 = vmatpush2.xpose.msra.mxu0 %v289
        %335 = vmatprep.subr.mxu0 0.0
        %336 = vmatpush2.xpose.msra.mxu0 %v286
        %337 = vmatprep.subr.mxu0 0.0
        %338 = vmatpush2.xpose.msra.mxu0 %v283
        %339 = vmatprep.subr.mxu0 0.0
        %340 = vmatpush2.xpose.msra.mxu0 %v280
        %341 = vmatprep.subr.mxu0 0.0
        %342 = vmatpush2.xpose.msra.mxu0 %v277
        %343 = vmatprep.subr.mxu0 0.0
        %344 = vmatpush2.xpose.msra.mxu0 %v274
        %345 = vmatprep.subr.mxu0 0.0
        %346 = vmatpush2.xpose.msra.mxu0 %v271
        %347 = vmatprep.subr.mxu0 0.0
        %348 = vmatpush2.xpose.msra.mxu0 %v268
        %349 = vmatprep.subr.mxu0 0.0
        %350 = vmatpush2.xpose.msra.mxu0 %v265
        %351 = vmatprep.subr.mxu0 0.0
        %352 = vmatpush2.xpose.msra.mxu0 %v262
        %353 = vmatprep.subr.mxu0 0.0
        %354 = vmatpush2.xpose.msra.mxu0 %v259
        %355 = vmatprep.subr.mxu0 0.0
        %356 = vmatpush2.xpose.msra.mxu0 %v256
        %357 = vmatprep.subr.mxu0 0.0
        %358 = vmatpush2.xpose.msra.mxu0 %v253
        %359 = vmatprep.subr.mxu0 0.0
        %360 = vmatpush2.xpose.msra.mxu0 %v250
        %361 = vmatprep.mubr.f32.mxu0 0.0
        %362 = vmatmul.mubr.f32.gmra.mxu0 %v199
        %v363 = vpop.f32.mrf.mxu0
        %v364 = vadd.f32 0.0, %v363
        %v365 = vpop.f32.mrf.mxu0
        %v366 = vadd.f32 0.0, %v365
        %367 = vdwg.mxu0
        %368 = vst [vmem:[%s156] sm:$0xff] %v364
        %369 = vst [vmem:[%s156 + $0x8] sm:$0xff] %v366
        %s370 = sand.u32 %s87, 1
        %s371 = scalar_lea.sflag [#allocation3], %s370
        %s372 = sand.u32 %s87, 1
        %s373 = smul.addr %s372, 16
        %s374 = scalar_lea.vmem [#allocation2], %s373
        // Predicated region
        $region29: #{tpu_custom_call.1} parent=27 // pred_check
          %p375 = pneg %p97
        $region30: #{tpu_custom_call.1} parent=27 // pred_check_branch
          %377 = sbr.rel (%p375) target = $region32
        $region31: #{tpu_custom_call.1} parent=27 // pred_region
          %s379 = ssub.s32 256, 256
          %380 = vsyncadd %s371, %s379
          %s381 = smul.addr %s20, 2
          %s382 = smul.addr %s21, 2
          %s383 = sadd.s32 %s381, %s382
          %s384 = smul.addr %s383, 128
          %s385 = scalar_lea.hbm %s2, %s384
          %s387 = sshll.u32 %s374, 4
          %s388 = int_to_ptr.vmem [resolvable:$true] %s387
          %390 = dma.vmem_to_hbm [thread:$0]  %s388, 256, %s385, %s371
        $region32: #{tpu_custom_call.1} parent=27 // pred_fallthru
          _
      $region28: #{tpu_custom_call.1} parent=5 // pred_fallthru
        _
      %p391 = scmp.le.s32.totalorder 2, %s11
      // Predicated region
      $region33: #{tpu_custom_call.1} parent=5 // pred_check
        %p392 = pneg %p391
      $region34: #{tpu_custom_call.1} parent=5 // pred_check_branch
        %394 = sbr.rel (%p392) target = $region36
      $region35: #{tpu_custom_call.1} parent=5 // pred_region
        %s395 = ssub.s32 %s11, 2
        // Predicated region
        $region37: #{tpu_custom_call.1} parent=35 // pred_check
          %p396 = pneg %p103
        $region38: #{tpu_custom_call.1} parent=35 // pred_check_branch
          %398 = sbr.rel (%p396) target = $region40
        $region39: #{tpu_custom_call.1} parent=35 // pred_region
          %s399 = sand.u32 %s88, 1
          %s400 = scalar_lea.sflag [#allocation3], %s399
          %s401 = sand.u32 %s88, 1
          %s402 = smul.addr %s401, 16
          %s403 = scalar_lea.vmem [#allocation2], %s402
          %404 = dma.done %s400, 256
        $region40: #{tpu_custom_call.1} parent=35 // pred_fallthru
          _
      $region36: #{tpu_custom_call.1} parent=5 // pred_fallthru
        _
    $region6: #{tpu_custom_call.1} parent=1 // loop_footer
      %s15 = sadd.s32 1, %s11
    $region7: #{tpu_custom_call.1} parent=1 // loop_footer_branch
      %10 = sbr.rel target = $region3
    $region8: #{tpu_custom_call.1} parent=1 // loop_exit
      _
    %405 = vsyncpa [#allocation3], 1
    %s406 = scalar_lea.sflag [#allocation3], 1
    %407 = vsyncpa %s406, 1

</llo_original>
